<compile_context>
chip_gen: v6e
topology: v6e:2x2x1
jax: 0.10.0
libtpu: 0.0.40
codegen_flags: <defaults>
</compile_context>

<pallas_src>
import jax
import jax.numpy as jnp
from jax import lax
from jax.experimental import pallas as pl
from jax.experimental.pallas import tpu as pltpu

BN_EPS = 1e-5
IN_CH = 120
H1_CH = 16
H2_CH = 32
OUT_CH = 3
MAX_TILE = 8192  # rows per grid step (multiple of 128); ~8 MiB of pipeline VMEM


def _round_up(x, m):
    return ((x + m - 1) // m) * m


def _cnn1d_kernel(
    x_ref,               # [TILE, 120]   (f32 or bf16)
    w1_ref, b1_ref,      # [120, 16] (BN-folded, x dtype), [1, 16] f32
    w2_ref, b2_ref,      # [16, 32]  (BN-folded, f32),     [1, 32] f32
    wfc_t_ref, bfc_ref,  # [3, 32] f32,                    [3, 1]  f32
    o_ref,               # [3, TILE] f32  (lane-dense, transposed output)
):
    # layer1: Conv1d(k=1) + folded BN -> matmul + bias, then ReLU (f32 accum).
    h1 = jnp.dot(x_ref[...], w1_ref[...],
                 preferred_element_type=jnp.float32) + b1_ref[...]
    h1 = jnp.maximum(h1, 0.0)

    # layer2
    h2 = jnp.dot(h1, w2_ref[...],
                 preferred_element_type=jnp.float32) + b2_ref[...]
    h2 = jnp.maximum(h2, 0.0)

    # fc: Linear(32 -> 3), computed transposed so the output block is
    # lane-dense: (3, TILE) = wfc_t (3,32) @ h2^T (32,TILE).
    o_t = lax.dot_general(wfc_t_ref[...], h2,
                          (((1,), (1,)), ((), ())),
                          preferred_element_type=jnp.float32)
    o_ref[...] = o_t + bfc_ref[...]


def init_params(key):
    """Deterministic parameter init mirroring the PyTorch module's shapes."""
    k1, k2, k3, k4, k5, k6 = jax.random.split(key, 6)

    # Conv1d weights: PyTorch shape (out, in, 1) -> stored transposed (in, out)
    w1 = jax.random.normal(k1, (IN_CH, H1_CH), jnp.float32) * 0.05
    b1 = jax.random.normal(k2, (1, H1_CH), jnp.float32) * 0.05
    w2 = jax.random.normal(k3, (H1_CH, H2_CH), jnp.float32) * 0.05
    b2 = jax.random.normal(k4, (1, H2_CH), jnp.float32) * 0.05
    # Linear: PyTorch-native (out=3, in=32)
    wfc = jax.random.normal(k5, (OUT_CH, H2_CH), jnp.float32) * 0.05
    bfc = jax.random.normal(k6, (OUT_CH,), jnp.float32) * 0.05

    # BatchNorm defaults: weight=1, bias=0, running_mean=0, running_var=1
    g1 = jnp.ones((1, H1_CH), jnp.float32)
    be1 = jnp.zeros((1, H1_CH), jnp.float32)
    m1 = jnp.zeros((1, H1_CH), jnp.float32)
    v1 = jnp.ones((1, H1_CH), jnp.float32)

    g2 = jnp.ones((1, H2_CH), jnp.float32)
    be2 = jnp.zeros((1, H2_CH), jnp.float32)
    m2 = jnp.zeros((1, H2_CH), jnp.float32)
    v2 = jnp.ones((1, H2_CH), jnp.float32)

    return dict(w1=w1, b1=b1, g1=g1, be1=be1, m1=m1, v1=v1,
                w2=w2, b2=b2, g2=g2, be2=be2, m2=m2, v2=v2,
                wfc=wfc, bfc=bfc)


def cnn_1d_experiment_forward(x_ncl, params, *, tile=MAX_TILE):
    """x_ncl: (N, 120, 1) in PyTorch NCL layout (f32 or bf16). Returns (N, 3) f32.

    The kernel reads x in its incoming dtype (no wrapper-side cast): deliver
    x in bf16 upstream to halve the HBM read traffic of this read-bound kernel.
    """
    assert x_ncl.ndim == 3 and x_ncl.shape[1] == IN_CH and x_ncl.shape[2] == 1
    n = x_ncl.shape[0]
    x = x_ncl.reshape(n, IN_CH)  # L=1 -> free reshape, no data movement

    # ---- Fold eval-mode BatchNorm into the conv weights/biases (once). ----
    s1 = params["g1"] * lax.rsqrt(params["v1"] + BN_EPS)            # [1, 16]
    w1f = params["w1"] * s1                                         # [120, 16]
    b1f = (params["b1"] - params["m1"]) * s1 + params["be1"]        # [1, 16]
    s2 = params["g2"] * lax.rsqrt(params["v2"] + BN_EPS)            # [1, 32]
    w2f = params["w2"] * s2                                         # [16, 32]
    b2f = (params["b2"] - params["m2"]) * s2 + params["be2"]        # [1, 32]

    # First-matmul weight matches x's dtype (bf16 MXU path when x is bf16);
    # everything downstream stays f32 (tiny, resident, exactness preserved).
    mm_dtype = jnp.bfloat16 if x.dtype == jnp.bfloat16 else jnp.float32
    w1k = w1f.astype(mm_dtype)
    wfc_t = params["wfc"].astype(jnp.float32)        # [3, 32]
    bfc_col = params["bfc"].reshape(OUT_CH, 1)       # [3, 1]

    # ---- Batch tiling: cdiv grid, no padding (edge block handled by Pallas).
    tile_n = max(128, min(_round_up(int(tile), 128), _round_up(n, 128)))
    grid = (pl.cdiv(n, tile_n),)

    # Scoped-VMEM budget: double-buffered x tile + double-buffered (8-sublane
    # padded) output tile + margin.  Set explicitly so large tiles clear
    # v5e's 16 MiB default; stays far below v7x's 64 MiB physical VMEM.
    x_tile_bytes = tile_n * IN_CH * x.dtype.itemsize
    out_tile_bytes = 8 * tile_n * 4
    vmem_need = 2 * (x_tile_bytes + out_tile_bytes) + (2 << 20)
    vmem_limit = int(min(max(vmem_need, 16 << 20), 48 << 20))

    weight_bytes = sum(int(a.size) * a.dtype.itemsize
                       for a in (w1k, b1f, w2f, b2f, wfc_t, bfc_col))
    cost = pl.CostEstimate(
        flops=2 * n * (IN_CH * H1_CH + H1_CH * H2_CH + H2_CH * OUT_CH),
        transcendentals=0,
        bytes_accessed=n * (IN_CH * x.dtype.itemsize + OUT_CH * 4) + weight_bytes,
    )

    def _resident(arr):
        # Full-array block with a constant index_map -> fetched once, stays
        # resident in VMEM across grid steps (weights total < 10 KB).
        return pl.BlockSpec(arr.shape, lambda i: (0, 0))

    in_specs = [
        pl.BlockSpec((tile_n, IN_CH), lambda i: (i, 0)),   # x tile (pipelined)
        _resident(w1k), _resident(b1f),
        _resident(w2f), _resident(b2f),
        _resident(wfc_t), _resident(bfc_col),
    ]
    # Lane-dense transposed output block: (3, tile_n), unmasked stores.
    out_specs = pl.BlockSpec((OUT_CH, tile_n), lambda i: (0, i))

    out_t = pl.pallas_call(
        _cnn1d_kernel,
        out_shape=jax.ShapeDtypeStruct((OUT_CH, n), jnp.float32),
        grid=grid,
        in_specs=in_specs,
        out_specs=out_specs,
        compiler_params=pltpu.CompilerParams(
            dimension_semantics=("parallel",),
            vmem_limit_bytes=vmem_limit),
        cost_estimate=cost,
    )(x, w1k, b1f, w2f, b2f, wfc_t, bfc_col)

    # Tiny (3, N) -> (N, 3) transpose (12 B/row vs 480 B/row of x read).
    return out_t.T


def _reference(x_ncl, p):
    """Pure-JAX reference (un-folded BN, eval mode) for correctness checking."""
    x = x_ncl.reshape(x_ncl.shape[0], IN_CH)
    h1 = x @ p["w1"] + p["b1"]
    h1 = (h1 - p["m1"]) * lax.rsqrt(p["v1"] + BN_EPS) * p["g1"] + p["be1"]
    h1 = jnp.maximum(h1, 0.0)
    h2 = h1 @ p["w2"] + p["b2"]
    h2 = (h2 - p["m2"]) * lax.rsqrt(p["v2"] + BN_EPS) * p["g2"] + p["be2"]
    h2 = jnp.maximum(h2, 0.0)
    return h2 @ p["wfc"].T + p["bfc"]


if __name__ == "__main__":
    key = jax.random.PRNGKey(0)
    kx1, kx2, kp = jax.random.split(key, 3)
    params = init_params(kp)

    # Small case: single (partial) grid block.
    N = 8
    x = jax.random.normal(kx1, (N, IN_CH, 1), jnp.float32)  # PyTorch NCL input
    out = jax.block_until_ready(cnn_1d_experiment_forward(x, params))
    ref = _reference(x, params)
    assert out.shape == (N, OUT_CH), out.shape
    assert jnp.allclose(out, ref, atol=1e-4, rtol=1e-4), "mismatch vs reference"

    # Ragged case: multi-step grid with a partial edge block (tile=128 -> grid=(3,)).
    N2 = 300
    x2 = jax.random.normal(kx2, (N2, IN_CH, 1), jnp.float32)
    out2 = jax.block_until_ready(
        cnn_1d_experiment_forward(x2, params, tile=128))
    ref2 = _reference(x2, params)
    assert out2.shape == (N2, OUT_CH), out2.shape
    assert jnp.allclose(out2, ref2, atol=1e-4, rtol=1e-4), "mismatch (ragged)"

    print("KERNEL_OK")
</pallas_src>

<mosaic_0001>
module attributes {stable_mosaic.version = 11 : i64} {
  func.func @_cnn1d_kernel(%arg0: i32, %arg1: memref<128x120xf32, #tpu.memory_space<vmem>>, %arg2: memref<120x16xf32, #tpu.memory_space<vmem>>, %arg3: memref<1x16xf32, #tpu.memory_space<vmem>>, %arg4: memref<16x32xf32, #tpu.memory_space<vmem>>, %arg5: memref<1x32xf32, #tpu.memory_space<vmem>>, %arg6: memref<3x32xf32, #tpu.memory_space<vmem>>, %arg7: memref<3x1xf32, #tpu.memory_space<vmem>>, %arg8: memref<3x128xf32, #tpu.memory_space<vmem>>) attributes {dimension_semantics = [#tpu.dimension_semantics<parallel>], iteration_bounds = array<i64: 1>, scalar_prefetch = 0 : i64, scratch_operands = 0 : i64, tpu.core_type = #tpu.core_type<tc>, window_params = [{transform_indices = @transform_0, window_bounds = array<i64: 128, 120>}, {pipeline_mode = #tpu.pipeline_mode<synchronous>, transform_indices = @transform_1, window_bounds = array<i64: 120, 16>}, {pipeline_mode = #tpu.pipeline_mode<synchronous>, transform_indices = @transform_2, window_bounds = array<i64: 1, 16>}, {pipeline_mode = #tpu.pipeline_mode<synchronous>, transform_indices = @transform_3, window_bounds = array<i64: 16, 32>}, {pipeline_mode = #tpu.pipeline_mode<synchronous>, transform_indices = @transform_4, window_bounds = array<i64: 1, 32>}, {pipeline_mode = #tpu.pipeline_mode<synchronous>, transform_indices = @transform_5, window_bounds = array<i64: 3, 32>}, {pipeline_mode = #tpu.pipeline_mode<synchronous>, transform_indices = @transform_6, window_bounds = array<i64: 3, 1>}, {transform_indices = @transform_7, window_bounds = array<i64: 3, 128>}]} {
    %c0 = arith.constant 0 : index
    %c0_0 = arith.constant 0 : index
    %0 = vector.load %arg1[%c0, %c0_0] : memref<128x120xf32, #tpu.memory_space<vmem>>, vector<128x120xf32>
    %c0_1 = arith.constant 0 : index
    %c0_2 = arith.constant 0 : index
    %1 = vector.load %arg2[%c0_1, %c0_2] : memref<120x16xf32, #tpu.memory_space<vmem>>, vector<120x16xf32>
    %cst = arith.constant dense<0.000000e+00> : vector<128x16xf32>
    %2 = tpu.matmul %0, %1, %cst {dimension_numbers = #tpu.dot_dimension_numbers<[1], [0], [0], [1], [0, 0, 1, 1], [], []>} : vector<128x120xf32>, vector<120x16xf32>, vector<128x16xf32> -> vector<128x16xf32>
    %c0_3 = arith.constant 0 : index
    %c0_4 = arith.constant 0 : index
    %3 = vector.load %arg3[%c0_3, %c0_4] : memref<1x16xf32, #tpu.memory_space<vmem>>, vector<1x16xf32>
    %4 = vector.broadcast %3 : vector<1x16xf32> to vector<128x16xf32>
    %5 = arith.addf %2, %4 : vector<128x16xf32>
    %cst_5 = arith.constant 0.000000e+00 : f32
    %6 = vector.broadcast %cst_5 : f32 to vector<128x16xf32>
    %7 = arith.maximumf %5, %6 : vector<128x16xf32>
    %c0_6 = arith.constant 0 : index
    %c0_7 = arith.constant 0 : index
    %8 = vector.load %arg4[%c0_6, %c0_7] : memref<16x32xf32, #tpu.memory_space<vmem>>, vector<16x32xf32>
    %cst_8 = arith.constant dense<0.000000e+00> : vector<128x32xf32>
    %9 = tpu.matmul %7, %8, %cst_8 {dimension_numbers = #tpu.dot_dimension_numbers<[1], [0], [0], [1], [0, 0, 1, 1], [], []>} : vector<128x16xf32>, vector<16x32xf32>, vector<128x32xf32> -> vector<128x32xf32>
    %c0_9 = arith.constant 0 : index
    %c0_10 = arith.constant 0 : index
    %10 = vector.load %arg5[%c0_9, %c0_10] : memref<1x32xf32, #tpu.memory_space<vmem>>, vector<1x32xf32>
    %11 = vector.broadcast %10 : vector<1x32xf32> to vector<128x32xf32>
    %12 = arith.addf %9, %11 : vector<128x32xf32>
    %cst_11 = arith.constant 0.000000e+00 : f32
    %13 = vector.broadcast %cst_11 : f32 to vector<128x32xf32>
    %14 = arith.maximumf %12, %13 : vector<128x32xf32>
    %c0_12 = arith.constant 0 : index
    %c0_13 = arith.constant 0 : index
    %15 = vector.load %arg6[%c0_12, %c0_13] : memref<3x32xf32, #tpu.memory_space<vmem>>, vector<3x32xf32>
    %cst_14 = arith.constant dense<0.000000e+00> : vector<3x128xf32>
    %16 = tpu.matmul %15, %14, %cst_14 {dimension_numbers = #tpu.dot_dimension_numbers<[1], [1], [0], [0], [0, 0, 1, 0], [], []>} : vector<3x32xf32>, vector<128x32xf32>, vector<3x128xf32> -> vector<3x128xf32>
    %c0_15 = arith.constant 0 : index
    %c0_16 = arith.constant 0 : index
    %17 = vector.load %arg7[%c0_15, %c0_16] : memref<3x1xf32, #tpu.memory_space<vmem>>, vector<3x1xf32>
    %18 = vector.broadcast %17 : vector<3x1xf32> to vector<3x128xf32>
    %19 = arith.addf %16, %18 : vector<3x128xf32>
    %c0_17 = arith.constant 0 : index
    %c0_18 = arith.constant 0 : index
    %20 = vector.load %arg8[%c0_17, %c0_18] : memref<3x128xf32, #tpu.memory_space<vmem>>, vector<3x128xf32>
    tpu.vector_store %arg8[%c0_17, %c0_18], %19 {strides = array<i32>} : memref<3x128xf32, #tpu.memory_space<vmem>>, vector<3x128xf32>,
    return
  }
  func.func @transform_0(%arg0: i32) -> (i32, i32) {
    %c0_i32 = arith.constant 0 : i32
    %c0_i32_0 = arith.constant 0 : i32
    return %arg0, %c0_i32 : i32, i32
  }
  func.func @transform_1(%arg0: i32) -> (i32, i32) {
    %c0_i32 = arith.constant 0 : i32
    %c0_i32_0 = arith.constant 0 : i32
    %c0_i32_1 = arith.constant 0 : i32
    return %c0_i32, %c0_i32_0 : i32, i32
  }
  func.func @transform_2(%arg0: i32) -> (i32, i32) {
    %c0_i32 = arith.constant 0 : i32
    %c0_i32_0 = arith.constant 0 : i32
    %c0_i32_1 = arith.constant 0 : i32
    return %c0_i32, %c0_i32_0 : i32, i32
  }
  func.func @transform_3(%arg0: i32) -> (i32, i32) {
    %c0_i32 = arith.constant 0 : i32
    %c0_i32_0 = arith.constant 0 : i32
    %c0_i32_1 = arith.constant 0 : i32
    return %c0_i32, %c0_i32_0 : i32, i32
  }
  func.func @transform_4(%arg0: i32) -> (i32, i32) {
    %c0_i32 = arith.constant 0 : i32
    %c0_i32_0 = arith.constant 0 : i32
    %c0_i32_1 = arith.constant 0 : i32
    return %c0_i32, %c0_i32_0 : i32, i32
  }
  func.func @transform_5(%arg0: i32) -> (i32, i32) {
    %c0_i32 = arith.constant 0 : i32
    %c0_i32_0 = arith.constant 0 : i32
    %c0_i32_1 = arith.constant 0 : i32
    return %c0_i32, %c0_i32_0 : i32, i32
  }
  func.func @transform_6(%arg0: i32) -> (i32, i32) {
    %c0_i32 = arith.constant 0 : i32
    %c0_i32_0 = arith.constant 0 : i32
    %c0_i32_1 = arith.constant 0 : i32
    return %c0_i32, %c0_i32_0 : i32, i32
  }
  func.func @transform_7(%arg0: i32) -> (i32, i32) {
    %c0_i32 = arith.constant 0 : i32
    %c0_i32_0 = arith.constant 0 : i32
    return %c0_i32, %arg0 : i32, i32
  }
}

</mosaic_0001>

<llo_original>
// kernel: tpu_custom_call.1
$region0: #{tpu_custom_call.1}
  #allocation0 [shape = 'u32[]', space=smem, size = 0x4, offset = 0x4, fixed_abs, tag = 'smem constant byte address 0x4 - core index']
  #allocation1 [shape = 'u32[144,128]{1,0:T(1,128)}', space=vmem, size = 0x12000, scoped, tag = 'internal scratch']
  %s0 = inlined_call_operand.vmem [shape: f32[8,120], index: 0, kind: input, shape index: {}]
  %s1 = inlined_call_operand.vmem [shape: f32[120,16], index: 1, kind: input, shape index: {}]
  %s2 = inlined_call_operand.vmem [shape: f32[1,16], index: 2, kind: input, shape index: {}]
  %s3 = inlined_call_operand.vmem [shape: f32[16,32], index: 3, kind: input, shape index: {}]
  %s4 = inlined_call_operand.vmem [shape: f32[1,32], index: 4, kind: input, shape index: {}]
  %s5 = inlined_call_operand.vmem [shape: f32[3,32], index: 5, kind: input, shape index: {}]
  %s6 = inlined_call_operand.vmem [shape: f32[3,1], index: 6, kind: input, shape index: {}]
  %s7 = inlined_call_operand.hbm [shape: f32[3,8], index: 7, kind: output, shape index: {}]
  %s8 = sld [smem:[#allocation0]]
  $region38: #{tpu_custom_call.1} parent=0
    _
  %s10 = ssub.s32 1, %s8
  %s11 = scalar_select 0, %s10, %s8
  $region1: #{tpu_custom_call.1} parent=0
    #allocation2 [shape = 'u8[2048]{0}', space=vmem, size = 0x800, scoped, tag = 'output window, operand 0, single buffered']
    #allocation3 [shape = 's32[1]{0}', space=sflag, size = 0x4, scoped, tag = 'scoped memory for tpu_custom_call.1']
    %12 = vsyncpa [#allocation3], 0
    // Predicated region
    $region2: #{tpu_custom_call.1} parent=1 // pred_check
      _
    $region3: #{tpu_custom_call.1} parent=1 // pred_check_branch
      %14 = sbr.rel (0) target = $region5
    $region4: #{tpu_custom_call.1} parent=1 // pred_region
      _
    $region5: #{tpu_custom_call.1} parent=1 // pred_fallthru
      _
    // Predicated region
    $region6: #{tpu_custom_call.1} parent=1 // pred_check
      _
    $region7: #{tpu_custom_call.1} parent=1 // pred_check_branch
      %16 = sbr.rel (0) target = $region9
    $region8: #{tpu_custom_call.1} parent=1 // pred_region
      _
    $region9: #{tpu_custom_call.1} parent=1 // pred_fallthru
      _
    // Predicated region
    $region10: #{tpu_custom_call.1} parent=1 // pred_check
      _
    $region11: #{tpu_custom_call.1} parent=1 // pred_check_branch
      %18 = sbr.rel (0) target = $region13
    $region12: #{tpu_custom_call.1} parent=1 // pred_region
      _
    $region13: #{tpu_custom_call.1} parent=1 // pred_fallthru
      _
    // Predicated region
    $region14: #{tpu_custom_call.1} parent=1 // pred_check
      _
    $region15: #{tpu_custom_call.1} parent=1 // pred_check_branch
      %20 = sbr.rel (0) target = $region17
    $region16: #{tpu_custom_call.1} parent=1 // pred_region
      _
    $region17: #{tpu_custom_call.1} parent=1 // pred_fallthru
      _
    // Predicated region
    $region18: #{tpu_custom_call.1} parent=1 // pred_check
      _
    $region19: #{tpu_custom_call.1} parent=1 // pred_check_branch
      %22 = sbr.rel (0) target = $region21
    $region20: #{tpu_custom_call.1} parent=1 // pred_region
      _
    $region21: #{tpu_custom_call.1} parent=1 // pred_fallthru
      _
    // Predicated region
    $region22: #{tpu_custom_call.1} parent=1 // pred_check
      _
    $region23: #{tpu_custom_call.1} parent=1 // pred_check_branch
      %24 = sbr.rel (0) target = $region25
    $region24: #{tpu_custom_call.1} parent=1 // pred_region
      _
    $region25: #{tpu_custom_call.1} parent=1 // pred_fallthru
      _
    // Predicated region
    $region26: #{tpu_custom_call.1} parent=1 // pred_check
      _
    $region27: #{tpu_custom_call.1} parent=1 // pred_check_branch
      %26 = sbr.rel (0) target = $region29
    $region28: #{tpu_custom_call.1} parent=1 // pred_region
      _
    $region29: #{tpu_custom_call.1} parent=1 // pred_fallthru
      _
    %v27 = vld [vmem:[%s0] sm:$0xff]
    %v28 = vld [vmem:[%s0 + $0x8] sm:$0xff]
    %v29 = vld [vmem:[%s0 + $0x10] sm:$0xff]
    %v30 = vld [vmem:[%s0 + $0x18] sm:$0xff]
    %v31 = vld [vmem:[%s0 + $0x20] sm:$0xff]
    %v32 = vld [vmem:[%s0 + $0x28] sm:$0xff]
    %v33 = vld [vmem:[%s0 + $0x30] sm:$0xff]
    %v34 = vld [vmem:[%s0 + $0x38] sm:$0xff]
    %v35 = vld [vmem:[%s0 + $0x40] sm:$0xff]
    %v36 = vld [vmem:[%s0 + $0x48] sm:$0xff]
    %v37 = vld [vmem:[%s0 + $0x50] sm:$0xff]
    %v38 = vld [vmem:[%s0 + $0x58] sm:$0xff]
    %v39 = vld [vmem:[%s0 + $0x60] sm:$0xff]
    %v40 = vld [vmem:[%s0 + $0x68] sm:$0xff]
    %v41 = vld [vmem:[%s0 + $0x70] sm:$0xff]
    %v42 = vld [vmem:[%s0 + $0x78] sm:$0xff]
    %v43 = vld [vmem:[%s1] sm:$0xff]
    %v44 = vld [vmem:[%s1 + $0x8] sm:$0xff]
    %v45 = vld [vmem:[%s1 + $0x10] sm:$0xff]
    %v46 = vld [vmem:[%s1 + $0x18] sm:$0xff]
    %v47 = vld [vmem:[%s1 + $0x20] sm:$0xff]
    %v48 = vld [vmem:[%s1 + $0x28] sm:$0xff]
    %v49 = vld [vmem:[%s1 + $0x30] sm:$0xff]
    %v50 = vld [vmem:[%s1 + $0x38] sm:$0xff]
    %v51 = vld [vmem:[%s1 + $0x40] sm:$0xff]
    %v52 = vld [vmem:[%s1 + $0x48] sm:$0xff]
    %v53 = vld [vmem:[%s1 + $0x50] sm:$0xff]
    %v54 = vld [vmem:[%s1 + $0x58] sm:$0xff]
    %v55 = vld [vmem:[%s1 + $0x60] sm:$0xff]
    %v56 = vld [vmem:[%s1 + $0x68] sm:$0xff]
    %v57 = vld [vmem:[%s1 + $0x70] sm:$0xff]
    %v58 = vld [vmem:[%s2] sm:$0x1]
    %v60 = vlaneseq
    %v61 = vshrl.u32 %v60, 7
    %v62 = vsub.s32 0, %v61
    %v63 = vrot.slane %v58, %v62
    %vm65 = vcmask 982016
    %v67 = vsel %vm65, %v27, 0
    %v70 = vsel %vm65, %v28, 0
    %v73 = vsel %vm65, %v29, 0
    %v76 = vsel %vm65, %v30, 0
    %v79 = vsel %vm65, %v31, 0
    %v82 = vsel %vm65, %v32, 0
    %v85 = vsel %vm65, %v33, 0
    %v88 = vsel %vm65, %v34, 0
    %v91 = vsel %vm65, %v35, 0
    %v94 = vsel %vm65, %v36, 0
    %v97 = vsel %vm65, %v37, 0
    %v100 = vsel %vm65, %v38, 0
    %v103 = vsel %vm65, %v39, 0
    %v106 = vsel %vm65, %v40, 0
    %v109 = vsel %vm65, %v41, 0
    %v112 = vsel %vm65, %v42, 0
    %114 = vmatprep.subr.mxu0 0.0
    %115 = vmatpush1.msra.mxu0 0.0
    %116 = vmatprep.subr.mxu0 0.0
    %117 = vmatpush1.msra.mxu0 %v57
    %118 = vmatprep.subr.mxu0 0.0
    %119 = vmatpush1.msra.mxu0 %v56
    %120 = vmatprep.subr.mxu0 0.0
    %121 = vmatpush1.msra.mxu0 %v55
    %122 = vmatprep.subr.mxu0 0.0
    %123 = vmatpush1.msra.mxu0 %v54
    %124 = vmatprep.subr.mxu0 0.0
    %125 = vmatpush1.msra.mxu0 %v53
    %126 = vmatprep.subr.mxu0 0.0
    %127 = vmatpush1.msra.mxu0 %v52
    %128 = vmatprep.subr.mxu0 0.0
    %129 = vmatpush1.msra.mxu0 %v51
    %130 = vmatprep.subr.mxu0 0.0
    %131 = vmatpush1.msra.mxu0 %v50
    %132 = vmatprep.subr.mxu0 0.0
    %133 = vmatpush1.msra.mxu0 %v49
    %134 = vmatprep.subr.mxu0 0.0
    %135 = vmatpush1.msra.mxu0 %v48
    %136 = vmatprep.subr.mxu0 0.0
    %137 = vmatpush1.msra.mxu0 %v47
    %138 = vmatprep.subr.mxu0 0.0
    %139 = vmatpush1.msra.mxu0 %v46
    %140 = vmatprep.subr.mxu0 0.0
    %141 = vmatpush1.msra.mxu0 %v45
    %142 = vmatprep.subr.mxu0 0.0
    %143 = vmatpush1.msra.mxu0 %v44
    %144 = vmatprep.subr.mxu0 0.0
    %145 = vmatpush1.msra.mxu0 %v43
    %146 = vmatprep.subr.mxu0 0.0
    %147 = vmatpush2.msra.mxu0 0.0
    %148 = vmatprep.subr.mxu0 0.0
    %149 = vmatpush2.msra.mxu0 0.0
    %150 = vmatprep.subr.mxu0 0.0
    %151 = vmatpush2.msra.mxu0 0.0
    %152 = vmatprep.subr.mxu0 0.0
    %153 = vmatpush2.msra.mxu0 0.0
    %154 = vmatprep.subr.mxu0 0.0
    %155 = vmatpush2.msra.mxu0 0.0
    %156 = vmatprep.subr.mxu0 0.0
    %157 = vmatpush2.msra.mxu0 0.0
    %158 = vmatprep.subr.mxu0 0.0
    %159 = vmatpush2.msra.mxu0 0.0
    %160 = vmatprep.subr.mxu0 0.0
    %161 = vmatpush2.msra.mxu0 0.0
    %162 = vmatprep.subr.mxu0 0.0
    %163 = vmatpush2.msra.mxu0 0.0
    %164 = vmatprep.subr.mxu0 0.0
    %165 = vmatpush2.msra.mxu0 0.0
    %166 = vmatprep.subr.mxu0 0.0
    %167 = vmatpush2.msra.mxu0 0.0
    %168 = vmatprep.subr.mxu0 0.0
    %169 = vmatpush2.msra.mxu0 0.0
    %170 = vmatprep.subr.mxu0 0.0
    %171 = vmatpush2.msra.mxu0 0.0
    %172 = vmatprep.subr.mxu0 0.0
    %173 = vmatpush2.msra.mxu0 0.0
    %174 = vmatprep.subr.mxu0 0.0
    %175 = vmatpush2.msra.mxu0 0.0
    %176 = vmatprep.subr.mxu0 0.0
    %177 = vmatpush2.msra.mxu0 0.0
    %178 = vmatprep.mubr.f32.mxu0 0.0
    %179 = vmatmul.mubr.f32.gmra.mxu0 %v67
    %v180 = vpop.f32.mrf.mxu0
    %v181 = vadd.f32 %v63, %v180
    %v182 = vpop.f32.mrf.mxu0
    %183 = vmatprep.mubr.f32.mxu0 0.0
    %184 = vmatmul.mubr.f32.gmra.mxu0 %v70
    %v185 = vpop.f32.mrf.mxu0
    %v186 = vadd.f32 %v63, %v185
    %v187 = vpop.f32.mrf.mxu0
    %188 = vmatprep.mubr.f32.mxu0 0.0
    %189 = vmatmul.mubr.f32.gmra.mxu0 %v73
    %v190 = vpop.f32.mrf.mxu0
    %v191 = vadd.f32 %v63, %v190
    %v192 = vpop.f32.mrf.mxu0
    %193 = vmatprep.mubr.f32.mxu0 0.0
    %194 = vmatmul.mubr.f32.gmra.mxu0 %v76
    %v195 = vpop.f32.mrf.mxu0
    %v196 = vadd.f32 %v63, %v195
    %v197 = vpop.f32.mrf.mxu0
    %198 = vmatprep.mubr.f32.mxu0 0.0
    %199 = vmatmul.mubr.f32.gmra.mxu0 %v79
    %v200 = vpop.f32.mrf.mxu0
    %v201 = vadd.f32 %v63, %v200
    %v202 = vpop.f32.mrf.mxu0
    %203 = vmatprep.mubr.f32.mxu0 0.0
    %204 = vmatmul.mubr.f32.gmra.mxu0 %v82
    %v205 = vpop.f32.mrf.mxu0
    %v206 = vadd.f32 %v63, %v205
    %v207 = vpop.f32.mrf.mxu0
    %208 = vmatprep.mubr.f32.mxu0 0.0
    %209 = vmatmul.mubr.f32.gmra.mxu0 %v85
    %v210 = vpop.f32.mrf.mxu0
    %v211 = vadd.f32 %v63, %v210
    %v212 = vpop.f32.mrf.mxu0
    %213 = vmatprep.mubr.f32.mxu0 0.0
    %214 = vmatmul.mubr.f32.gmra.mxu0 %v88
    %v215 = vpop.f32.mrf.mxu0
    %v216 = vadd.f32 %v63, %v215
    %v217 = vpop.f32.mrf.mxu0
    %218 = vmatprep.mubr.f32.mxu0 0.0
    %219 = vmatmul.mubr.f32.gmra.mxu0 %v91
    %v220 = vpop.f32.mrf.mxu0
    %v221 = vadd.f32 %v63, %v220
    %v222 = vpop.f32.mrf.mxu0
    %223 = vmatprep.mubr.f32.mxu0 0.0
    %224 = vmatmul.mubr.f32.gmra.mxu0 %v94
    %v225 = vpop.f32.mrf.mxu0
    %v226 = vadd.f32 %v63, %v225
    %v227 = vpop.f32.mrf.mxu0
    %228 = vmatprep.mubr.f32.mxu0 0.0
    %229 = vmatmul.mubr.f32.gmra.mxu0 %v97
    %v230 = vpop.f32.mrf.mxu0
    %v231 = vadd.f32 %v63, %v230
    %v232 = vpop.f32.mrf.mxu0
    %233 = vmatprep.mubr.f32.mxu0 0.0
    %234 = vmatmul.mubr.f32.gmra.mxu0 %v100
    %v235 = vpop.f32.mrf.mxu0
    %v236 = vadd.f32 %v63, %v235
    %v237 = vpop.f32.mrf.mxu0
    %238 = vmatprep.mubr.f32.mxu0 0.0
    %239 = vmatmul.mubr.f32.gmra.mxu0 %v103
    %v240 = vpop.f32.mrf.mxu0
    %v241 = vadd.f32 %v63, %v240
    %v242 = vpop.f32.mrf.mxu0
    %243 = vmatprep.mubr.f32.mxu0 0.0
    %244 = vmatmul.mubr.f32.gmra.mxu0 %v106
    %v245 = vpop.f32.mrf.mxu0
    %v246 = vadd.f32 %v63, %v245
    %v247 = vpop.f32.mrf.mxu0
    %248 = vmatprep.mubr.f32.mxu0 0.0
    %249 = vmatmul.mubr.f32.gmra.mxu0 %v109
    %v250 = vpop.f32.mrf.mxu0
    %v251 = vadd.f32 %v63, %v250
    %v252 = vpop.f32.mrf.mxu0
    %253 = vmatprep.mubr.f32.mxu0 0.0
    %254 = vmatmul.mubr.f32.gmra.mxu0 %v112
    %v255 = vpop.f32.mrf.mxu0
    %v256 = vadd.f32 %v63, %v255
    %v257 = vpop.f32.mrf.mxu0
    %258 = vdwg.mxu0
    %v259 = vmax.f32 %v181, 0.0
    %v260 = vmax.f32 %v186, 0.0
    %v261 = vmax.f32 %v191, 0.0
    %v262 = vmax.f32 %v196, 0.0
    %v263 = vmax.f32 %v201, 0.0
    %v264 = vmax.f32 %v206, 0.0
    %v265 = vmax.f32 %v211, 0.0
    %v266 = vmax.f32 %v216, 0.0
    %v267 = vmax.f32 %v221, 0.0
    %v268 = vmax.f32 %v226, 0.0
    %v269 = vmax.f32 %v231, 0.0
    %v270 = vmax.f32 %v236, 0.0
    %v271 = vmax.f32 %v241, 0.0
    %v272 = vmax.f32 %v246, 0.0
    %v273 = vmax.f32 %v251, 0.0
    %v274 = vmax.f32 %v256, 0.0
    %v275 = vld [vmem:[%s3] sm:$0xff]
    %v276 = vld [vmem:[%s3 + $0x8] sm:$0xff]
    %v277 = vld [vmem:[%s4] sm:$0x1]
    %v279 = vlaneseq
    %v280 = vshrl.u32 %v279, 7
    %v281 = vsub.s32 0, %v280
    %v282 = vrot.slane %v277, %v281
    %vm284 = vcmask 130048
    %v286 = vsel %vm284, %v259, 0
    %v289 = vsel %vm284, %v260, 0
    %v292 = vsel %vm284, %v261, 0
    %v295 = vsel %vm284, %v262, 0
    %v298 = vsel %vm284, %v263, 0
    %v301 = vsel %vm284, %v264, 0
    %v304 = vsel %vm284, %v265, 0
    %v307 = vsel %vm284, %v266, 0
    %v310 = vsel %vm284, %v267, 0
    %v313 = vsel %vm284, %v268, 0
    %v316 = vsel %vm284, %v269, 0
    %v319 = vsel %vm284, %v270, 0
    %v322 = vsel %vm284, %v271, 0
    %v325 = vsel %vm284, %v272, 0
    %v328 = vsel %vm284, %v273, 0
    %v331 = vsel %vm284, %v274, 0
    %333 = vmatprep.subr.mxu0 0.0
    %334 = vmatpush1.msra.mxu0 0.0
    %335 = vmatprep.subr.mxu0 0.0
    %336 = vmatpush1.msra.mxu0 0.0
    %337 = vmatprep.subr.mxu0 0.0
    %338 = vmatpush1.msra.mxu0 0.0
    %339 = vmatprep.subr.mxu0 0.0
    %340 = vmatpush1.msra.mxu0 0.0
    %341 = vmatprep.subr.mxu0 0.0
    %342 = vmatpush1.msra.mxu0 0.0
    %343 = vmatprep.subr.mxu0 0.0
    %344 = vmatpush1.msra.mxu0 0.0
    %345 = vmatprep.subr.mxu0 0.0
    %346 = vmatpush1.msra.mxu0 0.0
    %347 = vmatprep.subr.mxu0 0.0
    %348 = vmatpush1.msra.mxu0 0.0
    %349 = vmatprep.subr.mxu0 0.0
    %350 = vmatpush1.msra.mxu0 0.0
    %351 = vmatprep.subr.mxu0 0.0
    %352 = vmatpush1.msra.mxu0 0.0
    %353 = vmatprep.subr.mxu0 0.0
    %354 = vmatpush1.msra.mxu0 0.0
    %355 = vmatprep.subr.mxu0 0.0
    %356 = vmatpush1.msra.mxu0 0.0
    %357 = vmatprep.subr.mxu0 0.0
    %358 = vmatpush1.msra.mxu0 0.0
    %359 = vmatprep.subr.mxu0 0.0
    %360 = vmatpush1.msra.mxu0 0.0
    %361 = vmatprep.subr.mxu0 0.0
    %362 = vmatpush1.msra.mxu0 %v276
    %363 = vmatprep.subr.mxu0 0.0
    %364 = vmatpush1.msra.mxu0 %v275
    %365 = vmatprep.subr.mxu0 0.0
    %366 = vmatpush2.msra.mxu0 0.0
    %367 = vmatprep.subr.mxu0 0.0
    %368 = vmatpush2.msra.mxu0 0.0
    %369 = vmatprep.subr.mxu0 0.0
    %370 = vmatpush2.msra.mxu0 0.0
    %371 = vmatprep.subr.mxu0 0.0
    %372 = vmatpush2.msra.mxu0 0.0
    %373 = vmatprep.subr.mxu0 0.0
    %374 = vmatpush2.msra.mxu0 0.0
    %375 = vmatprep.subr.mxu0 0.0
    %376 = vmatpush2.msra.mxu0 0.0
    %377 = vmatprep.subr.mxu0 0.0
    %378 = vmatpush2.msra.mxu0 0.0
    %379 = vmatprep.subr.mxu0 0.0
    %380 = vmatpush2.msra.mxu0 0.0
    %381 = vmatprep.subr.mxu0 0.0
    %382 = vmatpush2.msra.mxu0 0.0
    %383 = vmatprep.subr.mxu0 0.0
    %384 = vmatpush2.msra.mxu0 0.0
    %385 = vmatprep.subr.mxu0 0.0
    %386 = vmatpush2.msra.mxu0 0.0
    %387 = vmatprep.subr.mxu0 0.0
    %388 = vmatpush2.msra.mxu0 0.0
    %389 = vmatprep.subr.mxu0 0.0
    %390 = vmatpush2.msra.mxu0 0.0
    %391 = vmatprep.subr.mxu0 0.0
    %392 = vmatpush2.msra.mxu0 0.0
    %393 = vmatprep.subr.mxu0 0.0
    %394 = vmatpush2.msra.mxu0 0.0
    %395 = vmatprep.subr.mxu0 0.0
    %396 = vmatpush2.msra.mxu0 0.0
    %397 = vmatprep.mubr.f32.mxu0 0.0
    %398 = vmatmul.mubr.f32.gmra.mxu0 %v286
    %v399 = vpop.f32.mrf.mxu0
    %v400 = vadd.f32 %v282, %v399
    %v401 = vpop.f32.mrf.mxu0
    %402 = vmatprep.mubr.f32.mxu0 0.0
    %403 = vmatmul.mubr.f32.gmra.mxu0 %v289
    %v404 = vpop.f32.mrf.mxu0
    %v405 = vadd.f32 %v282, %v404
    %v406 = vpop.f32.mrf.mxu0
    %407 = vmatprep.mubr.f32.mxu0 0.0
    %408 = vmatmul.mubr.f32.gmra.mxu0 %v292
    %v409 = vpop.f32.mrf.mxu0
    %v410 = vadd.f32 %v282, %v409
    %v411 = vpop.f32.mrf.mxu0
    %412 = vmatprep.mubr.f32.mxu0 0.0
    %413 = vmatmul.mubr.f32.gmra.mxu0 %v295
    %v414 = vpop.f32.mrf.mxu0
    %v415 = vadd.f32 %v282, %v414
    %v416 = vpop.f32.mrf.mxu0
    %417 = vmatprep.mubr.f32.mxu0 0.0
    %418 = vmatmul.mubr.f32.gmra.mxu0 %v298
    %v419 = vpop.f32.mrf.mxu0
    %v420 = vadd.f32 %v282, %v419
    %v421 = vpop.f32.mrf.mxu0
    %422 = vmatprep.mubr.f32.mxu0 0.0
    %423 = vmatmul.mubr.f32.gmra.mxu0 %v301
    %v424 = vpop.f32.mrf.mxu0
    %v425 = vadd.f32 %v282, %v424
    %v426 = vpop.f32.mrf.mxu0
    %427 = vmatprep.mubr.f32.mxu0 0.0
    %428 = vmatmul.mubr.f32.gmra.mxu0 %v304
    %v429 = vpop.f32.mrf.mxu0
    %v430 = vadd.f32 %v282, %v429
    %v431 = vpop.f32.mrf.mxu0
    %432 = vmatprep.mubr.f32.mxu0 0.0
    %433 = vmatmul.mubr.f32.gmra.mxu0 %v307
    %v434 = vpop.f32.mrf.mxu0
    %v435 = vadd.f32 %v282, %v434
    %v436 = vpop.f32.mrf.mxu0
    %437 = vmatprep.mubr.f32.mxu0 0.0
    %438 = vmatmul.mubr.f32.gmra.mxu0 %v310
    %v439 = vpop.f32.mrf.mxu0
    %v440 = vadd.f32 %v282, %v439
    %v441 = vpop.f32.mrf.mxu0
    %442 = vmatprep.mubr.f32.mxu0 0.0
    %443 = vmatmul.mubr.f32.gmra.mxu0 %v313
    %v444 = vpop.f32.mrf.mxu0
    %v445 = vadd.f32 %v282, %v444
    %v446 = vpop.f32.mrf.mxu0
    %447 = vmatprep.mubr.f32.mxu0 0.0
    %448 = vmatmul.mubr.f32.gmra.mxu0 %v316
    %v449 = vpop.f32.mrf.mxu0
    %v450 = vadd.f32 %v282, %v449
    %v451 = vpop.f32.mrf.mxu0
    %452 = vmatprep.mubr.f32.mxu0 0.0
    %453 = vmatmul.mubr.f32.gmra.mxu0 %v319
    %v454 = vpop.f32.mrf.mxu0
    %v455 = vadd.f32 %v282, %v454
    %v456 = vpop.f32.mrf.mxu0
    %457 = vmatprep.mubr.f32.mxu0 0.0
    %458 = vmatmul.mubr.f32.gmra.mxu0 %v322
    %v459 = vpop.f32.mrf.mxu0
    %v460 = vadd.f32 %v282, %v459
    %v461 = vpop.f32.mrf.mxu0
    %462 = vmatprep.mubr.f32.mxu0 0.0
    %463 = vmatmul.mubr.f32.gmra.mxu0 %v325
    %v464 = vpop.f32.mrf.mxu0
    %v465 = vadd.f32 %v282, %v464
    %v466 = vpop.f32.mrf.mxu0
    %467 = vmatprep.mubr.f32.mxu0 0.0
    %468 = vmatmul.mubr.f32.gmra.mxu0 %v328
    %v469 = vpop.f32.mrf.mxu0
    %v470 = vadd.f32 %v282, %v469
    %v471 = vpop.f32.mrf.mxu0
    %472 = vmatprep.mubr.f32.mxu0 0.0
    %473 = vmatmul.mubr.f32.gmra.mxu0 %v331
    %v474 = vpop.f32.mrf.mxu0
    %v475 = vadd.f32 %v282, %v474
    %v476 = vpop.f32.mrf.mxu0
    %477 = vdwg.mxu0
    %v478 = vmax.f32 %v400, 0.0
    %v479 = vmax.f32 %v405, 0.0
    %v480 = vmax.f32 %v410, 0.0
    %v481 = vmax.f32 %v415, 0.0
    %v482 = vmax.f32 %v420, 0.0
    %v483 = vmax.f32 %v425, 0.0
    %v484 = vmax.f32 %v430, 0.0
    %v485 = vmax.f32 %v435, 0.0
    %v486 = vmax.f32 %v440, 0.0
    %v487 = vmax.f32 %v445, 0.0
    %v488 = vmax.f32 %v450, 0.0
    %v489 = vmax.f32 %v455, 0.0
    %v490 = vmax.f32 %v460, 0.0
    %v491 = vmax.f32 %v465, 0.0
    %v492 = vmax.f32 %v470, 0.0
    %v493 = vmax.f32 %v475, 0.0
    %v494 = vld [vmem:[%s5] sm:$0x7]
    %v495 = vld [vmem:[%s6] sm:$0x7]
    %497 = vset.pattern.permute.xlu0 0
    %498 = vperm.xlu0 %497, %v495
    %v499 = vpop.permute.xlu0 %498
    %vm501 = vcmask 261120
    %v503 = vsel %vm501, %v494, 0
    %v506 = vsel %vm501, %v478, 0
    %v509 = vsel %vm501, %v479, 0
    %v512 = vsel %vm501, %v480, 0
    %v515 = vsel %vm501, %v481, 0
    %v518 = vsel %vm501, %v482, 0
    %v521 = vsel %vm501, %v483, 0
    %v524 = vsel %vm501, %v484, 0
    %v527 = vsel %vm501, %v485, 0
    %v530 = vsel %vm501, %v486, 0
    %v533 = vsel %vm501, %v487, 0
    %v536 = vsel %vm501, %v488, 0
    %v539 = vsel %vm501, %v489, 0
    %v542 = vsel %vm501, %v490, 0
    %v545 = vsel %vm501, %v491, 0
    %v548 = vsel %vm501, %v492, 0
    %v551 = vsel %vm501, %v493, 0
    %553 = vmatprep.subr.mxu0 0.0
    %554 = vmatpush1.xpose.msra.mxu0 %v551
    %555 = vmatprep.subr.mxu0 0.0
    %556 = vmatpush1.xpose.msra.mxu0 %v548
    %557 = vmatprep.subr.mxu0 0.0
    %558 = vmatpush1.xpose.msra.mxu0 %v545
    %559 = vmatprep.subr.mxu0 0.0
    %560 = vmatpush1.xpose.msra.mxu0 %v542
    %561 = vmatprep.subr.mxu0 0.0
    %562 = vmatpush1.xpose.msra.mxu0 %v539
    %563 = vmatprep.subr.mxu0 0.0
    %564 = vmatpush1.xpose.msra.mxu0 %v536
    %565 = vmatprep.subr.mxu0 0.0
    %566 = vmatpush1.xpose.msra.mxu0 %v533
    %567 = vmatprep.subr.mxu0 0.0
    %568 = vmatpush1.xpose.msra.mxu0 %v530
    %569 = vmatprep.subr.mxu0 0.0
    %570 = vmatpush1.xpose.msra.mxu0 %v527
    %571 = vmatprep.subr.mxu0 0.0
    %572 = vmatpush1.xpose.msra.mxu0 %v524
    %573 = vmatprep.subr.mxu0 0.0
    %574 = vmatpush1.xpose.msra.mxu0 %v521
    %575 = vmatprep.subr.mxu0 0.0
    %576 = vmatpush1.xpose.msra.mxu0 %v518
    %577 = vmatprep.subr.mxu0 0.0
    %578 = vmatpush1.xpose.msra.mxu0 %v515
    %579 = vmatprep.subr.mxu0 0.0
    %580 = vmatpush1.xpose.msra.mxu0 %v512
    %581 = vmatprep.subr.mxu0 0.0
    %582 = vmatpush1.xpose.msra.mxu0 %v509
    %583 = vmatprep.subr.mxu0 0.0
    %584 = vmatpush1.xpose.msra.mxu0 %v506
    %585 = vmatprep.subr.mxu0 0.0
    %586 = vmatpush2.xpose.msra.mxu0 0.0
    %587 = vmatprep.subr.mxu0 0.0
    %588 = vmatpush2.xpose.msra.mxu0 0.0
    %589 = vmatprep.subr.mxu0 0.0
    %590 = vmatpush2.xpose.msra.mxu0 0.0
    %591 = vmatprep.subr.mxu0 0.0
    %592 = vmatpush2.xpose.msra.mxu0 0.0
    %593 = vmatprep.subr.mxu0 0.0
    %594 = vmatpush2.xpose.msra.mxu0 0.0
    %595 = vmatprep.subr.mxu0 0.0
    %596 = vmatpush2.xpose.msra.mxu0 0.0
    %597 = vmatprep.subr.mxu0 0.0
    %598 = vmatpush2.xpose.msra.mxu0 0.0
    %599 = vmatprep.subr.mxu0 0.0
    %600 = vmatpush2.xpose.msra.mxu0 0.0
    %601 = vmatprep.subr.mxu0 0.0
    %602 = vmatpush2.xpose.msra.mxu0 0.0
    %603 = vmatprep.subr.mxu0 0.0
    %604 = vmatpush2.xpose.msra.mxu0 0.0
    %605 = vmatprep.subr.mxu0 0.0
    %606 = vmatpush2.xpose.msra.mxu0 0.0
    %607 = vmatprep.subr.mxu0 0.0
    %608 = vmatpush2.xpose.msra.mxu0 0.0
    %609 = vmatprep.subr.mxu0 0.0
    %610 = vmatpush2.xpose.msra.mxu0 0.0
    %611 = vmatprep.subr.mxu0 0.0
    %612 = vmatpush2.xpose.msra.mxu0 0.0
    %613 = vmatprep.subr.mxu0 0.0
    %614 = vmatpush2.xpose.msra.mxu0 0.0
    %615 = vmatprep.subr.mxu0 0.0
    %616 = vmatpush2.xpose.msra.mxu0 0.0
    %617 = vmatprep.mubr.f32.mxu0 0.0
    %618 = vmatmul.mubr.f32.gmra.mxu0 %v503
    %v619 = vpop.f32.mrf.mxu0
    %v620 = vadd.f32 %v499, %v619
    %v621 = vpop.f32.mrf.mxu0
    %622 = vdwg.mxu0
    %623 = vst [vmem:[#allocation2] sm:$0x7] %v620
    // Predicated region
    $region30: #{tpu_custom_call.1} parent=1 // pred_check
      _
    $region31: #{tpu_custom_call.1} parent=1 // pred_check_branch
      %625 = sbr.rel (0) target = $region33
    $region32: #{tpu_custom_call.1} parent=1 // pred_region
      %s627 = ssub.s32 64, 64
      %628 = vsyncadd [#allocation3], %s627
      %s630 = sshll.u32 [#allocation2], 4
      %s631 = int_to_ptr.vmem [resolvable:$true] %s630
      %633 = dma.vmem_to_hbm [thread:$0]  %s631, 64, %s7, [#allocation3]
    $region33: #{tpu_custom_call.1} parent=1 // pred_fallthru
      _
    // Predicated region
    $region34: #{tpu_custom_call.1} parent=1 // pred_check
      _
    $region35: #{tpu_custom_call.1} parent=1 // pred_check_branch
      %635 = sbr.rel (0) target = $region37
    $region36: #{tpu_custom_call.1} parent=1 // pred_region
      %636 = dma.done [#allocation3], 64
    $region37: #{tpu_custom_call.1} parent=1 // pred_fallthru
      _
    %637 = vsyncpa [#allocation3], 1

</llo_original>
